<compile_context>
chip_gen: v7x
topology: tpu7x:2x2x1
jax: 0.10.0
libtpu: 0.0.40
codegen_flags: <defaults>
</compile_context>

<pallas_src>
import jax
import jax.numpy as jnp
import numpy as np
from jax.experimental import pallas as pl
from jax.experimental.pallas import tpu as pltpu


def _decoder_kernel(wm0_ref, wm1_ref, wm2_ref, m0_ref, m1_ref, m2_ref,
                    mask_ref, p1_ref, p2_ref):
    tb = m0_ref.shape[0]

    # Hoisted broadcast of the tiny weight matrices so each contraction is a
    # standard batched matmul (lowers to MXU ops with f32 accumulation).
    wm0 = jnp.broadcast_to(wm0_ref[...], (tb,) + wm0_ref.shape)   # (tb, 2, D)
    wm1 = jnp.broadcast_to(wm1_ref[...], (tb,) + wm1_ref.shape)   # (tb, 1, D)
    wm2 = jnp.broadcast_to(wm2_ref[...], (tb,) + wm2_ref.shape)   # (tb, 1, D)

    # Channel (D) contraction on the MXU; tiles stay in their native dtype.
    y0 = jnp.einsum('bkd,bdl->bkl', wm0, m0_ref[...],
                    preferred_element_type=jnp.float32)           # (tb, 2, L)
    ya = jnp.einsum('bkd,bdl->bkl', wm1, m1_ref[...],
                    preferred_element_type=jnp.float32)           # (tb, 1, L)
    yb = jnp.einsum('bkd,bdl->bkl', wm2, m2_ref[...],
                    preferred_element_type=jnp.float32)           # (tb, 1, L)

    y1 = y0[:, 0, :] + ya[:, 0, :]                                # (tb, L)
    y2 = y0[:, 1, :] + yb[:, 0, :]                                # (tb, L)

    # Exact PyTorch mask_logits: y*mask + (-1e15)*(1-mask)  (handles fractional
    # masks; one mul + one fma per y instead of compare + selects).
    msk = mask_ref[...]                                           # (tb, L) f32
    madd = (msk - 1.0) * jnp.float32(1000000000000000.0)
    y1 = y1 * msk + madd
    y2 = y2 * msk + madd

    def _log_softmax(y):
        m = jnp.max(y, axis=-1, keepdims=True)
        s = y - m
        lse = jnp.log(jnp.sum(jnp.exp(s), axis=-1, keepdims=True))
        return s - lse

    p1_ref[...] = _log_softmax(y1)
    p2_ref[...] = _log_softmax(y2)


def _vmem_config():
    """Returns (input-block budget, vmem_limit_bytes), generation aware."""
    try:
        info = pltpu.get_tpu_info()
        cap = getattr(info, "vmem_capacity_bytes", None) or (64 * 1024 * 1024)
    except Exception:
        cap = 64 * 1024 * 1024          # conservative default (v7x: 64 MiB/TC)
    if cap >= 96 * 1024 * 1024:          # v5e / v6e class (128 MiB VMEM)
        return 40 * 1024 * 1024, 100 * 1024 * 1024
    return 20 * 1024 * 1024, 46 * 1024 * 1024


def _pick_block_b(B, D, L, itemsize, budget):
    # Per-batch-row VMEM: 3 double-buffered input streams + f32 epilogue
    # temporaries + double-buffered mask / outputs + weight broadcasts.
    per_row = 3 * D * L * itemsize * 2 + L * 4 * 16 + D * 4 * 4
    tb = max(1, int(budget // per_row))
    if tb >= B:
        # Whole batch fits in one block.  Split in two only on megacore parts
        # (>1 TensorCore); on single-TC chips splitting just halves DMA size.
        num_tc = 1
        try:
            num_tc = int(getattr(jax.devices()[0], "num_cores", 1) or 1)
        except Exception:
            pass
        if num_tc >= 2 and B >= 16:
            return ((B + 1) // 2 + 7) // 8 * 8
        return B
    return max(8, (tb // 8) * 8)   # multiple of 8 -> sublane-dense mask/out blocks


def qanet_decoder(W1, W2, M0, M1, M2, mask, *, block_b=None):
    """W1, W2: (2D,); M*: (B, D, L) any float dtype; mask: (B, L).

    Returns (p1, p2), each (B, L) float32 log-probabilities over L.
    """
    B, D, L = M0.shape
    m_dtype = M0.dtype
    itemsize = np.dtype(m_dtype).itemsize

    budget, vmem_limit = _vmem_config()
    if block_b is not None:
        tb = int(block_b)
    else:
        tb = _pick_block_b(B, D, L, itemsize, budget)
    if tb < B and tb % 8 != 0:
        tb = max(8, (tb // 8) * 8)
    if tb >= B:
        tb = B                      # full-dim block is always a legal block

    f32 = jnp.float32
    W1 = jnp.asarray(W1, f32)
    W2 = jnp.asarray(W2, f32)
    # Pack weights for the per-stream MXU contractions, in the M dtype so bf16
    # inputs stay bf16 on the MXU (f32 accumulation via preferred_element_type).
    Wm0 = jnp.stack([W1[:D], W2[:D]]).astype(m_dtype)      # (2, D): rows -> y1, y2
    Wm1 = W1[D:].reshape(1, D).astype(m_dtype)             # (1, D)
    Wm2 = W2[D:].reshape(1, D).astype(m_dtype)             # (1, D)
    mask32 = jnp.asarray(mask, f32)                        # (B, L), tiny

    grid = (pl.cdiv(B, tb),)
    m_spec = pl.BlockSpec((tb, D, L), lambda b: (b, 0, 0))  # full trailing dims
    w0_spec = pl.BlockSpec((2, D), lambda b: (0, 0))
    w1_spec = pl.BlockSpec((1, D), lambda b: (0, 0))
    bl_spec = pl.BlockSpec((tb, L), lambda b: (b, 0))       # mask & both outputs

    p1, p2 = pl.pallas_call(
        _decoder_kernel,
        grid=grid,
        in_specs=[w0_spec, w1_spec, w1_spec, m_spec, m_spec, m_spec, bl_spec],
        out_specs=(bl_spec, bl_spec),
        out_shape=(jax.ShapeDtypeStruct((B, L), f32),
                   jax.ShapeDtypeStruct((B, L), f32)),
        compiler_params=pltpu.CompilerParams(
            dimension_semantics=("parallel",),
            vmem_limit_bytes=vmem_limit),
    )(Wm0, Wm1, Wm2, M0, M1, M2, mask32)
    return p1, p2


def _reference(W1, W2, M0, M1, M2, mask):
    hi = jax.lax.Precision.HIGHEST
    X1 = jnp.concatenate([M0, M1], axis=1)
    X2 = jnp.concatenate([M0, M2], axis=1)
    Y1 = jnp.einsum('c,bcl->bl', W1, X1, precision=hi)
    Y2 = jnp.einsum('c,bcl->bl', W2, X2, precision=hi)
    neg = -1000000000000000.0
    Y1 = Y1 * mask + neg * (1.0 - mask)
    Y2 = Y2 * mask + neg * (1.0 - mask)
    return jax.nn.log_softmax(Y1, axis=1), jax.nn.log_softmax(Y2, axis=1)


if __name__ == "__main__":
    key = jax.random.PRNGKey(0)
    k_w1, k_w2, k_m0, k_m1, k_m2 = jax.random.split(key, 5)

    # --- case 1: float32, small shapes, single full-batch block -------------
    B, D, L = 2, 32, 16
    bound = 1.0 / np.sqrt(D)
    W1 = jax.random.uniform(k_w1, (2 * D,), jnp.float32, -bound, bound)
    W2 = jax.random.uniform(k_w2, (2 * D,), jnp.float32, -bound, bound)
    M0 = jax.random.normal(k_m0, (B, D, L), jnp.float32)
    M1 = jax.random.normal(k_m1, (B, D, L), jnp.float32)
    M2 = jax.random.normal(k_m2, (B, D, L), jnp.float32)
    lens = jnp.array([12, 10])
    mask = (jnp.arange(L)[None, :] < lens[:, None]).astype(jnp.float32)

    p1, p2 = jax.block_until_ready(qanet_decoder(W1, W2, M0, M1, M2, mask))
    assert p1.shape == (B, L) and p2.shape == (B, L)
    r1, r2 = _reference(W1, W2, M0, M1, M2, mask)
    # Tolerance covers MXU multi-pass f32 matmul rounding vs HIGHEST reference.
    np.testing.assert_allclose(np.asarray(p1), np.asarray(r1), rtol=1e-2, atol=1e-2)
    np.testing.assert_allclose(np.asarray(p2), np.asarray(r2), rtol=1e-2, atol=1e-2)

    # --- case 2: bf16 inputs, B not a multiple of the block, L not a multiple
    # of 128 (exercises the no-padding / partial-final-block path) -----------
    B2, L2 = 10, 200
    kb = jax.random.split(k_m0, 4)
    M0b = jax.random.normal(kb[0], (B2, D, L2), jnp.float32).astype(jnp.bfloat16)
    M1b = jax.random.normal(kb[1], (B2, D, L2), jnp.float32).astype(jnp.bfloat16)
    M2b = jax.random.normal(kb[2], (B2, D, L2), jnp.float32).astype(jnp.bfloat16)
    lens2 = jax.random.randint(kb[3], (B2,), L2 // 2, L2 + 1)
    mask2 = (jnp.arange(L2)[None, :] < lens2[:, None]).astype(jnp.float32)

    q1, q2 = jax.block_until_ready(
        qanet_decoder(W1, W2, M0b, M1b, M2b, mask2, block_b=8))
    s1, s2 = _reference(W1, W2,
                        M0b.astype(jnp.float32), M1b.astype(jnp.float32),
                        M2b.astype(jnp.float32), mask2)
    np.testing.assert_allclose(np.asarray(q1), np.asarray(s1), rtol=2e-2, atol=2e-2)
    np.testing.assert_allclose(np.asarray(q2), np.asarray(s2), rtol=2e-2, atol=2e-2)

    print("KERNEL_OK")
</pallas_src>

<mosaic_0001>
module attributes {stable_mosaic.version = 11 : i64} {
  func.func @_decoder_kernel(%arg0: i32, %arg1: memref<2x32xf32, #tpu.memory_space<vmem>>, %arg2: memref<1x32xf32, #tpu.memory_space<vmem>>, %arg3: memref<1x32xf32, #tpu.memory_space<vmem>>, %arg4: memref<2x32x16xf32, #tpu.memory_space<vmem>>, %arg5: memref<2x32x16xf32, #tpu.memory_space<vmem>>, %arg6: memref<2x32x16xf32, #tpu.memory_space<vmem>>, %arg7: memref<2x16xf32, #tpu.memory_space<vmem>>, %arg8: memref<2x16xf32, #tpu.memory_space<vmem>>, %arg9: memref<2x16xf32, #tpu.memory_space<vmem>>) attributes {dimension_semantics = [#tpu.dimension_semantics<parallel>], iteration_bounds = array<i64: 1>, scalar_prefetch = 0 : i64, scratch_operands = 0 : i64, tpu.core_type = #tpu.core_type<tc>, window_params = [{pipeline_mode = #tpu.pipeline_mode<synchronous>, transform_indices = @transform_0, window_bounds = array<i64: 2, 32>}, {pipeline_mode = #tpu.pipeline_mode<synchronous>, transform_indices = @transform_1, window_bounds = array<i64: 1, 32>}, {pipeline_mode = #tpu.pipeline_mode<synchronous>, transform_indices = @transform_2, window_bounds = array<i64: 1, 32>}, {transform_indices = @transform_3, window_bounds = array<i64: 2, 32, 16>}, {transform_indices = @transform_4, window_bounds = array<i64: 2, 32, 16>}, {transform_indices = @transform_5, window_bounds = array<i64: 2, 32, 16>}, {transform_indices = @transform_6, window_bounds = array<i64: 2, 16>}, {transform_indices = @transform_7, window_bounds = array<i64: 2, 16>}, {transform_indices = @transform_8, window_bounds = array<i64: 2, 16>}]} {
    %c0 = arith.constant 0 : index
    %c0_0 = arith.constant 0 : index
    %0 = vector.load %arg1[%c0, %c0_0] : memref<2x32xf32, #tpu.memory_space<vmem>>, vector<2x32xf32>
    %1 = vector.shape_cast %0 : vector<2x32xf32> to vector<1x2x32xf32>
    %2 = vector.broadcast %1 : vector<1x2x32xf32> to vector<2x2x32xf32>
    %c0_1 = arith.constant 0 : index
    %c0_2 = arith.constant 0 : index
    %3 = vector.load %arg2[%c0_1, %c0_2] : memref<1x32xf32, #tpu.memory_space<vmem>>, vector<1x32xf32>
    %4 = vector.shape_cast %3 : vector<1x32xf32> to vector<1x1x32xf32>
    %5 = vector.broadcast %4 : vector<1x1x32xf32> to vector<2x1x32xf32>
    %c0_3 = arith.constant 0 : index
    %c0_4 = arith.constant 0 : index
    %6 = vector.load %arg3[%c0_3, %c0_4] : memref<1x32xf32, #tpu.memory_space<vmem>>, vector<1x32xf32>
    %7 = vector.shape_cast %6 : vector<1x32xf32> to vector<1x1x32xf32>
    %8 = vector.broadcast %7 : vector<1x1x32xf32> to vector<2x1x32xf32>
    %c0_5 = arith.constant 0 : index
    %c0_6 = arith.constant 0 : index
    %c0_7 = arith.constant 0 : index
    %9 = vector.load %arg4[%c0_5, %c0_6, %c0_7] : memref<2x32x16xf32, #tpu.memory_space<vmem>>, vector<2x32x16xf32>
    "tpu.trace_start"() <{level = 10 : i32, message = "bkd,bdl->bkl"}> : () -> ()
    %cst = arith.constant dense<0.000000e+00> : vector<2x2x16xf32>
    %10 = tpu.matmul %2, %9, %cst {dimension_numbers = #tpu.dot_dimension_numbers<[2], [1], [1], [2], [0, 0, 0, 1, 1, 2], [0], [0]>} : vector<2x2x32xf32>, vector<2x32x16xf32>, vector<2x2x16xf32> -> vector<2x2x16xf32>
    "tpu.trace_stop"() : () -> ()
    %c0_8 = arith.constant 0 : index
    %c0_9 = arith.constant 0 : index
    %c0_10 = arith.constant 0 : index
    %11 = vector.load %arg5[%c0_8, %c0_9, %c0_10] : memref<2x32x16xf32, #tpu.memory_space<vmem>>, vector<2x32x16xf32>
    "tpu.trace_start"() <{level = 10 : i32, message = "bkd,bdl->bkl"}> : () -> ()
    %cst_11 = arith.constant dense<0.000000e+00> : vector<2x1x16xf32>
    %12 = tpu.matmul %5, %11, %cst_11 {dimension_numbers = #tpu.dot_dimension_numbers<[2], [1], [1], [2], [0, 0, 0, 1, 1, 2], [0], [0]>} : vector<2x1x32xf32>, vector<2x32x16xf32>, vector<2x1x16xf32> -> vector<2x1x16xf32>
    "tpu.trace_stop"() : () -> ()
    %c0_12 = arith.constant 0 : index
    %c0_13 = arith.constant 0 : index
    %c0_14 = arith.constant 0 : index
    %13 = vector.load %arg6[%c0_12, %c0_13, %c0_14] : memref<2x32x16xf32, #tpu.memory_space<vmem>>, vector<2x32x16xf32>
    "tpu.trace_start"() <{level = 10 : i32, message = "bkd,bdl->bkl"}> : () -> ()
    %cst_15 = arith.constant dense<0.000000e+00> : vector<2x1x16xf32>
    %14 = tpu.matmul %8, %13, %cst_15 {dimension_numbers = #tpu.dot_dimension_numbers<[2], [1], [1], [2], [0, 0, 0, 1, 1, 2], [0], [0]>} : vector<2x1x32xf32>, vector<2x32x16xf32>, vector<2x1x16xf32> -> vector<2x1x16xf32>
    "tpu.trace_stop"() : () -> ()
    %15 = vector.extract_strided_slice %10 {offsets = [0, 0, 0], sizes = [2, 1, 16], strides = [1, 1, 1]} : vector<2x2x16xf32> to vector<2x1x16xf32>
    %16 = vector.shape_cast %15 : vector<2x1x16xf32> to vector<2x16xf32>
    %17 = vector.shape_cast %12 : vector<2x1x16xf32> to vector<2x16xf32>
    %18 = arith.addf %16, %17 : vector<2x16xf32>
    %19 = vector.extract_strided_slice %10 {offsets = [0, 1, 0], sizes = [2, 1, 16], strides = [1, 1, 1]} : vector<2x2x16xf32> to vector<2x1x16xf32>
    %20 = vector.shape_cast %19 : vector<2x1x16xf32> to vector<2x16xf32>
    %21 = vector.shape_cast %14 : vector<2x1x16xf32> to vector<2x16xf32>
    %22 = arith.addf %20, %21 : vector<2x16xf32>
    %c0_16 = arith.constant 0 : index
    %c0_17 = arith.constant 0 : index
    %23 = vector.load %arg7[%c0_16, %c0_17] : memref<2x16xf32, #tpu.memory_space<vmem>>, vector<2x16xf32>
    %cst_18 = arith.constant 1.000000e+00 : f32
    %24 = vector.broadcast %cst_18 : f32 to vector<2x16xf32>
    %25 = arith.subf %23, %24 : vector<2x16xf32>
    %cst_19 = arith.constant 9.99999986E+14 : f32
    %26 = vector.broadcast %cst_19 : f32 to vector<2x16xf32>
    %27 = arith.mulf %25, %26 : vector<2x16xf32>
    %28 = arith.mulf %18, %23 : vector<2x16xf32>
    %29 = arith.addf %28, %27 : vector<2x16xf32>
    %30 = arith.mulf %22, %23 : vector<2x16xf32>
    %31 = arith.addf %30, %27 : vector<2x16xf32>
    %cst_20 = arith.constant dense<0xFF800000> : vector<2xf32>
    %32 = vector.multi_reduction <maximumf>, %29, %cst_20 [1] : vector<2x16xf32> to vector<2xf32>
    %33 = vector.shape_cast %32 : vector<2xf32> to vector<2x1xf32>
    %34 = vector.broadcast %33 : vector<2x1xf32> to vector<2x16xf32>
    %35 = arith.subf %29, %34 : vector<2x16xf32>
    %36 = math.exp %35 : vector<2x16xf32>
    %cst_21 = arith.constant dense<0.000000e+00> : vector<2xf32>
    %37 = vector.multi_reduction <add>, %36, %cst_21 [1] : vector<2x16xf32> to vector<2xf32>
    %38 = vector.shape_cast %37 : vector<2xf32> to vector<2x1xf32>
    %39 = math.log %38 : vector<2x1xf32>
    %40 = vector.broadcast %39 : vector<2x1xf32> to vector<2x16xf32>
    %41 = arith.subf %35, %40 : vector<2x16xf32>
    %c0_22 = arith.constant 0 : index
    %c0_23 = arith.constant 0 : index
    %42 = vector.load %arg8[%c0_22, %c0_23] : memref<2x16xf32, #tpu.memory_space<vmem>>, vector<2x16xf32>
    tpu.vector_store %arg8[%c0_22, %c0_23], %41 {strides = array<i32>} : memref<2x16xf32, #tpu.memory_space<vmem>>, vector<2x16xf32>,
    %cst_24 = arith.constant dense<0xFF800000> : vector<2xf32>
    %43 = vector.multi_reduction <maximumf>, %31, %cst_24 [1] : vector<2x16xf32> to vector<2xf32>
    %44 = vector.shape_cast %43 : vector<2xf32> to vector<2x1xf32>
    %45 = vector.broadcast %44 : vector<2x1xf32> to vector<2x16xf32>
    %46 = arith.subf %31, %45 : vector<2x16xf32>
    %47 = math.exp %46 : vector<2x16xf32>
    %cst_25 = arith.constant dense<0.000000e+00> : vector<2xf32>
    %48 = vector.multi_reduction <add>, %47, %cst_25 [1] : vector<2x16xf32> to vector<2xf32>
    %49 = vector.shape_cast %48 : vector<2xf32> to vector<2x1xf32>
    %50 = math.log %49 : vector<2x1xf32>
    %51 = vector.broadcast %50 : vector<2x1xf32> to vector<2x16xf32>
    %52 = arith.subf %46, %51 : vector<2x16xf32>
    %c0_26 = arith.constant 0 : index
    %c0_27 = arith.constant 0 : index
    %53 = vector.load %arg9[%c0_26, %c0_27] : memref<2x16xf32, #tpu.memory_space<vmem>>, vector<2x16xf32>
    tpu.vector_store %arg9[%c0_26, %c0_27], %52 {strides = array<i32>} : memref<2x16xf32, #tpu.memory_space<vmem>>, vector<2x16xf32>,
    return
  }
  func.func @transform_0(%arg0: i32) -> (i32, i32) {
    %c0_i32 = arith.constant 0 : i32
    %c0_i32_0 = arith.constant 0 : i32
    %c0_i32_1 = arith.constant 0 : i32
    return %c0_i32, %c0_i32_0 : i32, i32
  }
  func.func @transform_1(%arg0: i32) -> (i32, i32) {
    %c0_i32 = arith.constant 0 : i32
    %c0_i32_0 = arith.constant 0 : i32
    %c0_i32_1 = arith.constant 0 : i32
    return %c0_i32, %c0_i32_0 : i32, i32
  }
  func.func @transform_2(%arg0: i32) -> (i32, i32) {
    %c0_i32 = arith.constant 0 : i32
    %c0_i32_0 = arith.constant 0 : i32
    %c0_i32_1 = arith.constant 0 : i32
    return %c0_i32, %c0_i32_0 : i32, i32
  }
  func.func @transform_3(%arg0: i32) -> (i32, i32, i32) {
    %c0_i32 = arith.constant 0 : i32
    %c0_i32_0 = arith.constant 0 : i32
    %c0_i32_1 = arith.constant 0 : i32
    return %arg0, %c0_i32, %c0_i32_0 : i32, i32, i32
  }
  func.func @transform_4(%arg0: i32) -> (i32, i32, i32) {
    %c0_i32 = arith.constant 0 : i32
    %c0_i32_0 = arith.constant 0 : i32
    %c0_i32_1 = arith.constant 0 : i32
    return %arg0, %c0_i32, %c0_i32_0 : i32, i32, i32
  }
  func.func @transform_5(%arg0: i32) -> (i32, i32, i32) {
    %c0_i32 = arith.constant 0 : i32
    %c0_i32_0 = arith.constant 0 : i32
    %c0_i32_1 = arith.constant 0 : i32
    return %arg0, %c0_i32, %c0_i32_0 : i32, i32, i32
  }
  func.func @transform_6(%arg0: i32) -> (i32, i32) {
    %c0_i32 = arith.constant 0 : i32
    %c0_i32_0 = arith.constant 0 : i32
    return %arg0, %c0_i32 : i32, i32
  }
  func.func @transform_7(%arg0: i32) -> (i32, i32) {
    %c0_i32 = arith.constant 0 : i32
    %c0_i32_0 = arith.constant 0 : i32
    return %arg0, %c0_i32 : i32, i32
  }
  func.func @transform_8(%arg0: i32) -> (i32, i32) {
    %c0_i32 = arith.constant 0 : i32
    %c0_i32_0 = arith.constant 0 : i32
    return %arg0, %c0_i32 : i32, i32
  }
}

</mosaic_0001>

<llo_original>
// kernel: tpu_custom_call.1
$region0: #{tpu_custom_call.1}
  #allocation0 [shape = 'u32[]', space=smem, size = 0x4, offset = 0x4, fixed_abs, tag = 'smem constant byte address 0x4 - core index']
  #allocation1 [shape = 'u32[144,128]{1,0:T(1,128)}', space=vmem, size = 0x12000, scoped, tag = 'internal scratch']
  %s0 = inlined_call_operand.vmem [shape: f32[2,32], index: 0, kind: input, shape index: {}]
  %s1 = inlined_call_operand.vmem [shape: f32[1,32], index: 1, kind: input, shape index: {}]
  %s2 = inlined_call_operand.vmem [shape: f32[1,32], index: 2, kind: input, shape index: {}]
  %s3 = inlined_call_operand.vmem [shape: f32[2,32,16], index: 3, kind: input, shape index: {}]
  %s4 = inlined_call_operand.vmem [shape: f32[2,32,16], index: 4, kind: input, shape index: {}]
  %s5 = inlined_call_operand.vmem [shape: f32[2,32,16], index: 5, kind: input, shape index: {}]
  %s6 = inlined_call_operand.vmem [shape: f32[2,16], index: 6, kind: input, shape index: {}]
  %s7 = inlined_call_operand.hbm [shape: f32[2,16], index: 7, kind: output, shape index: {0}]
  %s8 = inlined_call_operand.hbm [shape: f32[2,16], index: 8, kind: output, shape index: {1}]
  %9 = xla_tuple %s7, %s8
  %s10 = sld [smem:[#allocation0]]
  $region46: #{tpu_custom_call.1} parent=0
    _
  %s12 = ssub.s32 1, %s10
  %s13 = scalar_select 0, %s12, %s10
  $region1: #{tpu_custom_call.1} parent=0
    #allocation2 [shape = 'u8[1024]{0}', space=vmem, size = 0x400, scoped, tag = 'output window, operand 0, single buffered']
    #allocation3 [shape = 's32[1]{0}', space=sflag, size = 0x4, scoped, tag = 'scoped memory for tpu_custom_call.1']
    #allocation4 [shape = 'u8[1024]{0}', space=vmem, size = 0x400, scoped, tag = 'output window, operand 1, single buffered']
    #allocation5 [shape = 's32[1]{0}', space=sflag, size = 0x4, scoped, tag = 'scoped memory for tpu_custom_call.1']
    %14 = vsyncpa [#allocation3], 0
    %15 = vsyncpa [#allocation5], 0
    // Predicated region
    $region2: #{tpu_custom_call.1} parent=1 // pred_check
      _
    $region3: #{tpu_custom_call.1} parent=1 // pred_check_branch
      %17 = sbr.rel (0) target = $region5
    $region4: #{tpu_custom_call.1} parent=1 // pred_region
      _
    $region5: #{tpu_custom_call.1} parent=1 // pred_fallthru
      _
    // Predicated region
    $region6: #{tpu_custom_call.1} parent=1 // pred_check
      _
    $region7: #{tpu_custom_call.1} parent=1 // pred_check_branch
      %19 = sbr.rel (0) target = $region9
    $region8: #{tpu_custom_call.1} parent=1 // pred_region
      _
    $region9: #{tpu_custom_call.1} parent=1 // pred_fallthru
      _
    // Predicated region
    $region10: #{tpu_custom_call.1} parent=1 // pred_check
      _
    $region11: #{tpu_custom_call.1} parent=1 // pred_check_branch
      %21 = sbr.rel (0) target = $region13
    $region12: #{tpu_custom_call.1} parent=1 // pred_region
      _
    $region13: #{tpu_custom_call.1} parent=1 // pred_fallthru
      _
    // Predicated region
    $region14: #{tpu_custom_call.1} parent=1 // pred_check
      _
    $region15: #{tpu_custom_call.1} parent=1 // pred_check_branch
      %23 = sbr.rel (0) target = $region17
    $region16: #{tpu_custom_call.1} parent=1 // pred_region
      _
    $region17: #{tpu_custom_call.1} parent=1 // pred_fallthru
      _
    // Predicated region
    $region18: #{tpu_custom_call.1} parent=1 // pred_check
      _
    $region19: #{tpu_custom_call.1} parent=1 // pred_check_branch
      %25 = sbr.rel (0) target = $region21
    $region20: #{tpu_custom_call.1} parent=1 // pred_region
      _
    $region21: #{tpu_custom_call.1} parent=1 // pred_fallthru
      _
    // Predicated region
    $region22: #{tpu_custom_call.1} parent=1 // pred_check
      _
    $region23: #{tpu_custom_call.1} parent=1 // pred_check_branch
      %27 = sbr.rel (0) target = $region25
    $region24: #{tpu_custom_call.1} parent=1 // pred_region
      _
    $region25: #{tpu_custom_call.1} parent=1 // pred_fallthru
      _
    // Predicated region
    $region26: #{tpu_custom_call.1} parent=1 // pred_check
      _
    $region27: #{tpu_custom_call.1} parent=1 // pred_check_branch
      %29 = sbr.rel (0) target = $region29
    $region28: #{tpu_custom_call.1} parent=1 // pred_region
      _
    $region29: #{tpu_custom_call.1} parent=1 // pred_fallthru
      _
    %v30 = vld [vmem:[%s0] sm:$0x3]
    %v31 = vld [vmem:[%s1] sm:$0x1]
    %v32 = vld [vmem:[%s2] sm:$0x1]
    %v33 = vld [vmem:[%s3] sm:$0xff]
    %v34 = vld [vmem:[%s3 + $0x8] sm:$0xff]
    %v35 = vld [vmem:[%s3 + $0x10] sm:$0xff]
    %v36 = vld [vmem:[%s3 + $0x18] sm:$0xff]
    %v37 = vld [vmem:[%s3 + $0x20] sm:$0xff]
    %v38 = vld [vmem:[%s3 + $0x28] sm:$0xff]
    %v39 = vld [vmem:[%s3 + $0x30] sm:$0xff]
    %v40 = vld [vmem:[%s3 + $0x38] sm:$0xff]
    %vm41 = vcmask 261120
    %v43 = vsel %vm41, %v30, 0
    %45 = vmatprep.subr.mxu0 0.0
    %46 = vmatpush1.msra.mxu0 %v33
    %47 = vmatprep.subr.mxu0 0.0
    %48 = vmatpush1.msra.mxu0 %v34
    %49 = vmatprep.subr.mxu0 0.0
    %50 = vmatpush1.msra.mxu0 %v35
    %51 = vmatprep.subr.mxu0 0.0
    %52 = vmatpush1.msra.mxu0 %v36
    %53 = vmatprep.subr.mxu0 0.0
    %54 = vmatpush1.msra.mxu0 0.0
    %55 = vmatprep.subr.mxu0 0.0
    %56 = vmatpush1.msra.mxu0 0.0
    %57 = vmatprep.subr.mxu0 0.0
    %58 = vmatpush1.msra.mxu0 0.0
    %59 = vmatprep.subr.mxu0 0.0
    %60 = vmatpush1.msra.mxu0 0.0
    %61 = vmatprep.subr.mxu0 0.0
    %62 = vmatpush1.msra.mxu0 0.0
    %63 = vmatprep.subr.mxu0 0.0
    %64 = vmatpush1.msra.mxu0 0.0
    %65 = vmatprep.subr.mxu0 0.0
    %66 = vmatpush1.msra.mxu0 0.0
    %67 = vmatprep.subr.mxu0 0.0
    %68 = vmatpush1.msra.mxu0 0.0
    %69 = vmatprep.subr.mxu0 0.0
    %70 = vmatpush1.msra.mxu0 0.0
    %71 = vmatprep.subr.mxu0 0.0
    %72 = vmatpush1.msra.mxu0 0.0
    %73 = vmatprep.subr.mxu0 0.0
    %74 = vmatpush1.msra.mxu0 0.0
    %75 = vmatprep.subr.mxu0 0.0
    %76 = vmatpush1.msra.mxu0 0.0
    %77 = vmatprep.subr.mxu0 0.0
    %78 = vmatpush1.msra.mxu0 0.0
    %79 = vmatprep.subr.mxu0 0.0
    %80 = vmatpush1.msra.mxu0 0.0
    %81 = vmatprep.subr.mxu0 0.0
    %82 = vmatpush1.msra.mxu0 0.0
    %83 = vmatprep.subr.mxu0 0.0
    %84 = vmatpush1.msra.mxu0 0.0
    %85 = vmatprep.subr.mxu0 0.0
    %86 = vmatpush1.msra.mxu0 0.0
    %87 = vmatprep.subr.mxu0 0.0
    %88 = vmatpush1.msra.mxu0 0.0
    %89 = vmatprep.subr.mxu0 0.0
    %90 = vmatpush1.msra.mxu0 0.0
    %91 = vmatprep.subr.mxu0 0.0
    %92 = vmatpush1.msra.mxu0 0.0
    %93 = vmatprep.subr.mxu0 0.0
    %94 = vmatpush1.msra.mxu0 0.0
    %95 = vmatprep.subr.mxu0 0.0
    %96 = vmatpush1.msra.mxu0 0.0
    %97 = vmatprep.subr.mxu0 0.0
    %98 = vmatpush1.msra.mxu0 0.0
    %99 = vmatprep.subr.mxu0 0.0
    %100 = vmatpush1.msra.mxu0 0.0
    %101 = vmatprep.subr.mxu0 0.0
    %102 = vmatpush1.msra.mxu0 0.0
    %103 = vmatprep.subr.mxu0 0.0
    %104 = vmatpush1.msra.mxu0 0.0
    %105 = vmatprep.subr.mxu0 0.0
    %106 = vmatpush1.msra.mxu0 0.0
    %107 = vmatprep.subr.mxu0 0.0
    %108 = vmatpush1.msra.mxu0 0.0
    %109 = vmatprep.mubr.f32.mxu0 0.0
    %110 = vmatmul.mubr.f32.gmra.mrb[0].mxu0 %v43
    %v111 = vpop.f32.mrb[0].mxu0
    %v112 = vadd.f32 0.0, %v111
    %v113 = vpop.f32.mrb[0].mxu0
    %114 = vdwg.mxu0
    %115 = vmatprep.subr.mxu0 0.0
    %116 = vmatpush1.msra.mxu0 %v37
    %117 = vmatprep.subr.mxu0 0.0
    %118 = vmatpush1.msra.mxu0 %v38
    %119 = vmatprep.subr.mxu0 0.0
    %120 = vmatpush1.msra.mxu0 %v39
    %121 = vmatprep.subr.mxu0 0.0
    %122 = vmatpush1.msra.mxu0 %v40
    %123 = vmatprep.subr.mxu0 0.0
    %124 = vmatpush1.msra.mxu0 0.0
    %125 = vmatprep.subr.mxu0 0.0
    %126 = vmatpush1.msra.mxu0 0.0
    %127 = vmatprep.subr.mxu0 0.0
    %128 = vmatpush1.msra.mxu0 0.0
    %129 = vmatprep.subr.mxu0 0.0
    %130 = vmatpush1.msra.mxu0 0.0
    %131 = vmatprep.subr.mxu0 0.0
    %132 = vmatpush1.msra.mxu0 0.0
    %133 = vmatprep.subr.mxu0 0.0
    %134 = vmatpush1.msra.mxu0 0.0
    %135 = vmatprep.subr.mxu0 0.0
    %136 = vmatpush1.msra.mxu0 0.0
    %137 = vmatprep.subr.mxu0 0.0
    %138 = vmatpush1.msra.mxu0 0.0
    %139 = vmatprep.subr.mxu0 0.0
    %140 = vmatpush1.msra.mxu0 0.0
    %141 = vmatprep.subr.mxu0 0.0
    %142 = vmatpush1.msra.mxu0 0.0
    %143 = vmatprep.subr.mxu0 0.0
    %144 = vmatpush1.msra.mxu0 0.0
    %145 = vmatprep.subr.mxu0 0.0
    %146 = vmatpush1.msra.mxu0 0.0
    %147 = vmatprep.subr.mxu0 0.0
    %148 = vmatpush1.msra.mxu0 0.0
    %149 = vmatprep.subr.mxu0 0.0
    %150 = vmatpush1.msra.mxu0 0.0
    %151 = vmatprep.subr.mxu0 0.0
    %152 = vmatpush1.msra.mxu0 0.0
    %153 = vmatprep.subr.mxu0 0.0
    %154 = vmatpush1.msra.mxu0 0.0
    %155 = vmatprep.subr.mxu0 0.0
    %156 = vmatpush1.msra.mxu0 0.0
    %157 = vmatprep.subr.mxu0 0.0
    %158 = vmatpush1.msra.mxu0 0.0
    %159 = vmatprep.subr.mxu0 0.0
    %160 = vmatpush1.msra.mxu0 0.0
    %161 = vmatprep.subr.mxu0 0.0
    %162 = vmatpush1.msra.mxu0 0.0
    %163 = vmatprep.subr.mxu0 0.0
    %164 = vmatpush1.msra.mxu0 0.0
    %165 = vmatprep.subr.mxu0 0.0
    %166 = vmatpush1.msra.mxu0 0.0
    %167 = vmatprep.subr.mxu0 0.0
    %168 = vmatpush1.msra.mxu0 0.0
    %169 = vmatprep.subr.mxu0 0.0
    %170 = vmatpush1.msra.mxu0 0.0
    %171 = vmatprep.subr.mxu0 0.0
    %172 = vmatpush1.msra.mxu0 0.0
    %173 = vmatprep.subr.mxu0 0.0
    %174 = vmatpush1.msra.mxu0 0.0
    %175 = vmatprep.subr.mxu0 0.0
    %176 = vmatpush1.msra.mxu0 0.0
    %177 = vmatprep.subr.mxu0 0.0
    %178 = vmatpush1.msra.mxu0 0.0
    %179 = vmatprep.mubr.f32.mxu0 0.0
    %180 = vmatmul.mubr.f32.gmra.mrb[0].mxu0 %v43
    %v181 = vpop.f32.mrb[0].mxu0
    %v182 = vadd.f32 0.0, %v181
    %v183 = vpop.f32.mrb[0].mxu0
    %184 = vdwg.mxu0
    %v185 = vld [vmem:[%s4] sm:$0xff]
    %v186 = vld [vmem:[%s4 + $0x8] sm:$0xff]
    %v187 = vld [vmem:[%s4 + $0x10] sm:$0xff]
    %v188 = vld [vmem:[%s4 + $0x18] sm:$0xff]
    %v189 = vld [vmem:[%s4 + $0x20] sm:$0xff]
    %v190 = vld [vmem:[%s4 + $0x28] sm:$0xff]
    %v191 = vld [vmem:[%s4 + $0x30] sm:$0xff]
    %v192 = vld [vmem:[%s4 + $0x38] sm:$0xff]
    %v194 = vsel %vm41, %v31, 0
    %196 = vmatprep.subr.mxu0 0.0
    %197 = vmatpush1.msra.mxu0 %v185
    %198 = vmatprep.subr.mxu0 0.0
    %199 = vmatpush1.msra.mxu0 %v186
    %200 = vmatprep.subr.mxu0 0.0
    %201 = vmatpush1.msra.mxu0 %v187
    %202 = vmatprep.subr.mxu0 0.0
    %203 = vmatpush1.msra.mxu0 %v188
    %204 = vmatprep.subr.mxu0 0.0
    %205 = vmatpush1.msra.mxu0 0.0
    %206 = vmatprep.subr.mxu0 0.0
    %207 = vmatpush1.msra.mxu0 0.0
    %208 = vmatprep.subr.mxu0 0.0
    %209 = vmatpush1.msra.mxu0 0.0
    %210 = vmatprep.subr.mxu0 0.0
    %211 = vmatpush1.msra.mxu0 0.0
    %212 = vmatprep.subr.mxu0 0.0
    %213 = vmatpush1.msra.mxu0 0.0
    %214 = vmatprep.subr.mxu0 0.0
    %215 = vmatpush1.msra.mxu0 0.0
    %216 = vmatprep.subr.mxu0 0.0
    %217 = vmatpush1.msra.mxu0 0.0
    %218 = vmatprep.subr.mxu0 0.0
    %219 = vmatpush1.msra.mxu0 0.0
    %220 = vmatprep.subr.mxu0 0.0
    %221 = vmatpush1.msra.mxu0 0.0
    %222 = vmatprep.subr.mxu0 0.0
    %223 = vmatpush1.msra.mxu0 0.0
    %224 = vmatprep.subr.mxu0 0.0
    %225 = vmatpush1.msra.mxu0 0.0
    %226 = vmatprep.subr.mxu0 0.0
    %227 = vmatpush1.msra.mxu0 0.0
    %228 = vmatprep.subr.mxu0 0.0
    %229 = vmatpush1.msra.mxu0 0.0
    %230 = vmatprep.subr.mxu0 0.0
    %231 = vmatpush1.msra.mxu0 0.0
    %232 = vmatprep.subr.mxu0 0.0
    %233 = vmatpush1.msra.mxu0 0.0
    %234 = vmatprep.subr.mxu0 0.0
    %235 = vmatpush1.msra.mxu0 0.0
    %236 = vmatprep.subr.mxu0 0.0
    %237 = vmatpush1.msra.mxu0 0.0
    %238 = vmatprep.subr.mxu0 0.0
    %239 = vmatpush1.msra.mxu0 0.0
    %240 = vmatprep.subr.mxu0 0.0
    %241 = vmatpush1.msra.mxu0 0.0
    %242 = vmatprep.subr.mxu0 0.0
    %243 = vmatpush1.msra.mxu0 0.0
    %244 = vmatprep.subr.mxu0 0.0
    %245 = vmatpush1.msra.mxu0 0.0
    %246 = vmatprep.subr.mxu0 0.0
    %247 = vmatpush1.msra.mxu0 0.0
    %248 = vmatprep.subr.mxu0 0.0
    %249 = vmatpush1.msra.mxu0 0.0
    %250 = vmatprep.subr.mxu0 0.0
    %251 = vmatpush1.msra.mxu0 0.0
    %252 = vmatprep.subr.mxu0 0.0
    %253 = vmatpush1.msra.mxu0 0.0
    %254 = vmatprep.subr.mxu0 0.0
    %255 = vmatpush1.msra.mxu0 0.0
    %256 = vmatprep.subr.mxu0 0.0
    %257 = vmatpush1.msra.mxu0 0.0
    %258 = vmatprep.subr.mxu0 0.0
    %259 = vmatpush1.msra.mxu0 0.0
    %260 = vmatprep.mubr.f32.mxu0 0.0
    %261 = vmatmul.mubr.f32.gmra.mrb[0].mxu0 %v194
    %v262 = vpop.f32.mrb[0].mxu0
    %v263 = vadd.f32 0.0, %v262
    %v264 = vpop.f32.mrb[0].mxu0
    %265 = vdwg.mxu0
    %266 = vmatprep.subr.mxu0 0.0
    %267 = vmatpush1.msra.mxu0 %v189
    %268 = vmatprep.subr.mxu0 0.0
    %269 = vmatpush1.msra.mxu0 %v190
    %270 = vmatprep.subr.mxu0 0.0
    %271 = vmatpush1.msra.mxu0 %v191
    %272 = vmatprep.subr.mxu0 0.0
    %273 = vmatpush1.msra.mxu0 %v192
    %274 = vmatprep.subr.mxu0 0.0
    %275 = vmatpush1.msra.mxu0 0.0
    %276 = vmatprep.subr.mxu0 0.0
    %277 = vmatpush1.msra.mxu0 0.0
    %278 = vmatprep.subr.mxu0 0.0
    %279 = vmatpush1.msra.mxu0 0.0
    %280 = vmatprep.subr.mxu0 0.0
    %281 = vmatpush1.msra.mxu0 0.0
    %282 = vmatprep.subr.mxu0 0.0
    %283 = vmatpush1.msra.mxu0 0.0
    %284 = vmatprep.subr.mxu0 0.0
    %285 = vmatpush1.msra.mxu0 0.0
    %286 = vmatprep.subr.mxu0 0.0
    %287 = vmatpush1.msra.mxu0 0.0
    %288 = vmatprep.subr.mxu0 0.0
    %289 = vmatpush1.msra.mxu0 0.0
    %290 = vmatprep.subr.mxu0 0.0
    %291 = vmatpush1.msra.mxu0 0.0
    %292 = vmatprep.subr.mxu0 0.0
    %293 = vmatpush1.msra.mxu0 0.0
    %294 = vmatprep.subr.mxu0 0.0
    %295 = vmatpush1.msra.mxu0 0.0
    %296 = vmatprep.subr.mxu0 0.0
    %297 = vmatpush1.msra.mxu0 0.0
    %298 = vmatprep.subr.mxu0 0.0
    %299 = vmatpush1.msra.mxu0 0.0
    %300 = vmatprep.subr.mxu0 0.0
    %301 = vmatpush1.msra.mxu0 0.0
    %302 = vmatprep.subr.mxu0 0.0
    %303 = vmatpush1.msra.mxu0 0.0
    %304 = vmatprep.subr.mxu0 0.0
    %305 = vmatpush1.msra.mxu0 0.0
    %306 = vmatprep.subr.mxu0 0.0
    %307 = vmatpush1.msra.mxu0 0.0
    %308 = vmatprep.subr.mxu0 0.0
    %309 = vmatpush1.msra.mxu0 0.0
    %310 = vmatprep.subr.mxu0 0.0
    %311 = vmatpush1.msra.mxu0 0.0
    %312 = vmatprep.subr.mxu0 0.0
    %313 = vmatpush1.msra.mxu0 0.0
    %314 = vmatprep.subr.mxu0 0.0
    %315 = vmatpush1.msra.mxu0 0.0
    %316 = vmatprep.subr.mxu0 0.0
    %317 = vmatpush1.msra.mxu0 0.0
    %318 = vmatprep.subr.mxu0 0.0
    %319 = vmatpush1.msra.mxu0 0.0
    %320 = vmatprep.subr.mxu0 0.0
    %321 = vmatpush1.msra.mxu0 0.0
    %322 = vmatprep.subr.mxu0 0.0
    %323 = vmatpush1.msra.mxu0 0.0
    %324 = vmatprep.subr.mxu0 0.0
    %325 = vmatpush1.msra.mxu0 0.0
    %326 = vmatprep.subr.mxu0 0.0
    %327 = vmatpush1.msra.mxu0 0.0
    %328 = vmatprep.subr.mxu0 0.0
    %329 = vmatpush1.msra.mxu0 0.0
    %330 = vmatprep.mubr.f32.mxu0 0.0
    %331 = vmatmul.mubr.f32.gmra.mrb[0].mxu0 %v194
    %v332 = vpop.f32.mrb[0].mxu0
    %v333 = vadd.f32 0.0, %v332
    %v334 = vpop.f32.mrb[0].mxu0
    %335 = vdwg.mxu0
    %v336 = vld [vmem:[%s5] sm:$0xff]
    %v337 = vld [vmem:[%s5 + $0x8] sm:$0xff]
    %v338 = vld [vmem:[%s5 + $0x10] sm:$0xff]
    %v339 = vld [vmem:[%s5 + $0x18] sm:$0xff]
    %v340 = vld [vmem:[%s5 + $0x20] sm:$0xff]
    %v341 = vld [vmem:[%s5 + $0x28] sm:$0xff]
    %v342 = vld [vmem:[%s5 + $0x30] sm:$0xff]
    %v343 = vld [vmem:[%s5 + $0x38] sm:$0xff]
    %v345 = vsel %vm41, %v32, 0
    %347 = vmatprep.subr.mxu0 0.0
    %348 = vmatpush1.msra.mxu0 %v336
    %349 = vmatprep.subr.mxu0 0.0
    %350 = vmatpush1.msra.mxu0 %v337
    %351 = vmatprep.subr.mxu0 0.0
    %352 = vmatpush1.msra.mxu0 %v338
    %353 = vmatprep.subr.mxu0 0.0
    %354 = vmatpush1.msra.mxu0 %v339
    %355 = vmatprep.subr.mxu0 0.0
    %356 = vmatpush1.msra.mxu0 0.0
    %357 = vmatprep.subr.mxu0 0.0
    %358 = vmatpush1.msra.mxu0 0.0
    %359 = vmatprep.subr.mxu0 0.0
    %360 = vmatpush1.msra.mxu0 0.0
    %361 = vmatprep.subr.mxu0 0.0
    %362 = vmatpush1.msra.mxu0 0.0
    %363 = vmatprep.subr.mxu0 0.0
    %364 = vmatpush1.msra.mxu0 0.0
    %365 = vmatprep.subr.mxu0 0.0
    %366 = vmatpush1.msra.mxu0 0.0
    %367 = vmatprep.subr.mxu0 0.0
    %368 = vmatpush1.msra.mxu0 0.0
    %369 = vmatprep.subr.mxu0 0.0
    %370 = vmatpush1.msra.mxu0 0.0
    %371 = vmatprep.subr.mxu0 0.0
    %372 = vmatpush1.msra.mxu0 0.0
    %373 = vmatprep.subr.mxu0 0.0
    %374 = vmatpush1.msra.mxu0 0.0
    %375 = vmatprep.subr.mxu0 0.0
    %376 = vmatpush1.msra.mxu0 0.0
    %377 = vmatprep.subr.mxu0 0.0
    %378 = vmatpush1.msra.mxu0 0.0
    %379 = vmatprep.subr.mxu0 0.0
    %380 = vmatpush1.msra.mxu0 0.0
    %381 = vmatprep.subr.mxu0 0.0
    %382 = vmatpush1.msra.mxu0 0.0
    %383 = vmatprep.subr.mxu0 0.0
    %384 = vmatpush1.msra.mxu0 0.0
    %385 = vmatprep.subr.mxu0 0.0
    %386 = vmatpush1.msra.mxu0 0.0
    %387 = vmatprep.subr.mxu0 0.0
    %388 = vmatpush1.msra.mxu0 0.0
    %389 = vmatprep.subr.mxu0 0.0
    %390 = vmatpush1.msra.mxu0 0.0
    %391 = vmatprep.subr.mxu0 0.0
    %392 = vmatpush1.msra.mxu0 0.0
    %393 = vmatprep.subr.mxu0 0.0
    %394 = vmatpush1.msra.mxu0 0.0
    %395 = vmatprep.subr.mxu0 0.0
    %396 = vmatpush1.msra.mxu0 0.0
    %397 = vmatprep.subr.mxu0 0.0
    %398 = vmatpush1.msra.mxu0 0.0
    %399 = vmatprep.subr.mxu0 0.0
    %400 = vmatpush1.msra.mxu0 0.0
    %401 = vmatprep.subr.mxu0 0.0
    %402 = vmatpush1.msra.mxu0 0.0
    %403 = vmatprep.subr.mxu0 0.0
    %404 = vmatpush1.msra.mxu0 0.0
    %405 = vmatprep.subr.mxu0 0.0
    %406 = vmatpush1.msra.mxu0 0.0
    %407 = vmatprep.subr.mxu0 0.0
    %408 = vmatpush1.msra.mxu0 0.0
    %409 = vmatprep.subr.mxu0 0.0
    %410 = vmatpush1.msra.mxu0 0.0
    %411 = vmatprep.mubr.f32.mxu0 0.0
    %412 = vmatmul.mubr.f32.gmra.mrb[0].mxu0 %v345
    %v413 = vpop.f32.mrb[0].mxu0
    %v414 = vadd.f32 0.0, %v413
    %v415 = vpop.f32.mrb[0].mxu0
    %416 = vdwg.mxu0
    %417 = vmatprep.subr.mxu0 0.0
    %418 = vmatpush1.msra.mxu0 %v340
    %419 = vmatprep.subr.mxu0 0.0
    %420 = vmatpush1.msra.mxu0 %v341
    %421 = vmatprep.subr.mxu0 0.0
    %422 = vmatpush1.msra.mxu0 %v342
    %423 = vmatprep.subr.mxu0 0.0
    %424 = vmatpush1.msra.mxu0 %v343
    %425 = vmatprep.subr.mxu0 0.0
    %426 = vmatpush1.msra.mxu0 0.0
    %427 = vmatprep.subr.mxu0 0.0
    %428 = vmatpush1.msra.mxu0 0.0
    %429 = vmatprep.subr.mxu0 0.0
    %430 = vmatpush1.msra.mxu0 0.0
    %431 = vmatprep.subr.mxu0 0.0
    %432 = vmatpush1.msra.mxu0 0.0
    %433 = vmatprep.subr.mxu0 0.0
    %434 = vmatpush1.msra.mxu0 0.0
    %435 = vmatprep.subr.mxu0 0.0
    %436 = vmatpush1.msra.mxu0 0.0
    %437 = vmatprep.subr.mxu0 0.0
    %438 = vmatpush1.msra.mxu0 0.0
    %439 = vmatprep.subr.mxu0 0.0
    %440 = vmatpush1.msra.mxu0 0.0
    %441 = vmatprep.subr.mxu0 0.0
    %442 = vmatpush1.msra.mxu0 0.0
    %443 = vmatprep.subr.mxu0 0.0
    %444 = vmatpush1.msra.mxu0 0.0
    %445 = vmatprep.subr.mxu0 0.0
    %446 = vmatpush1.msra.mxu0 0.0
    %447 = vmatprep.subr.mxu0 0.0
    %448 = vmatpush1.msra.mxu0 0.0
    %449 = vmatprep.subr.mxu0 0.0
    %450 = vmatpush1.msra.mxu0 0.0
    %451 = vmatprep.subr.mxu0 0.0
    %452 = vmatpush1.msra.mxu0 0.0
    %453 = vmatprep.subr.mxu0 0.0
    %454 = vmatpush1.msra.mxu0 0.0
    %455 = vmatprep.subr.mxu0 0.0
    %456 = vmatpush1.msra.mxu0 0.0
    %457 = vmatprep.subr.mxu0 0.0
    %458 = vmatpush1.msra.mxu0 0.0
    %459 = vmatprep.subr.mxu0 0.0
    %460 = vmatpush1.msra.mxu0 0.0
    %461 = vmatprep.subr.mxu0 0.0
    %462 = vmatpush1.msra.mxu0 0.0
    %463 = vmatprep.subr.mxu0 0.0
    %464 = vmatpush1.msra.mxu0 0.0
    %465 = vmatprep.subr.mxu0 0.0
    %466 = vmatpush1.msra.mxu0 0.0
    %467 = vmatprep.subr.mxu0 0.0
    %468 = vmatpush1.msra.mxu0 0.0
    %469 = vmatprep.subr.mxu0 0.0
    %470 = vmatpush1.msra.mxu0 0.0
    %471 = vmatprep.subr.mxu0 0.0
    %472 = vmatpush1.msra.mxu0 0.0
    %473 = vmatprep.subr.mxu0 0.0
    %474 = vmatpush1.msra.mxu0 0.0
    %475 = vmatprep.subr.mxu0 0.0
    %476 = vmatpush1.msra.mxu0 0.0
    %477 = vmatprep.subr.mxu0 0.0
    %478 = vmatpush1.msra.mxu0 0.0
    %479 = vmatprep.subr.mxu0 0.0
    %480 = vmatpush1.msra.mxu0 0.0
    %481 = vmatprep.mubr.f32.mxu0 0.0
    %482 = vmatmul.mubr.f32.gmra.mrb[0].mxu0 %v345
    %v483 = vpop.f32.mrb[0].mxu0
    %v484 = vadd.f32 0.0, %v483
    %v485 = vpop.f32.mrb[0].mxu0
    %486 = vdwg.mxu0
    %v487 = vadd.f32 %v112, %v263
    %v488 = vadd.f32 %v182, %v333
    %v491 = vrot.slane %v414, 7
    %v492 = vrot.slane %v484, 7
    %v495 = vadd.f32 %v112, %v491
    %v496 = vadd.f32 %v182, %v492
    %v497 = vld [vmem:[%s6] sm:$0x3]
    %v498 = vsub.f32 %v497, 1.0
    %v499 = vmul.f32 %v498, 1e+15
    %v501 = vrot.slane %v497, 1
    %v504 = vmul.f32 %v487, %v497
    %v505 = vmul.f32 %v488, %v501
    %v507 = vrot.slane %v499, 1
    %v510 = vadd.f32 %v504, %v499
    %v511 = vadd.f32 %v505, %v507
    %v512 = vrot.slane %v497, 7
    %v514 = vmul.f32 %v495, %v512
    %v515 = vmul.f32 %v496, %v497
    %v516 = vrot.slane %v499, 7
    %v518 = vadd.f32 %v514, %v516
    %v519 = vadd.f32 %v515, %v499
    %v522 = vrot.slane %v511, 7
    %vm523 = vcmask 1041409
    %v524 = vsel %vm523, %v522, %v510
    %vm526 = vcmask 123904
    %v527 = vsel %vm526, %v524, -inf
    %528 = vmax.xlane.f32.xlu0 %v527
    %v529 = vpop.xlane.xlu0 %528
    %v531 = vrot.slane %v529, 1
    %v534 = vsub.f32 %v510, %v529
    %v535 = vsub.f32 %v511, %v531
    %v536 = vmul.f32 %v534, 1.442695
    %v537 = vpow.pop %v536
    %v538 = vmul.f32 %v535, 1.442695
    %v539 = vpow.pop %v538
    %v542 = vrot.slane %v539, 7
    %v543 = vsel %vm523, %v542, %v537
    %v545 = vsel %vm526, %v543, 0.0
    %546 = vadd.xlane.f32.xlu0 %v545
    %v547 = vpop.xlane.xlu0 %546
    %v548 = vlog2.pop %v547
    %v549 = vmul.f32 %v548, 0.6931472
    %v551 = vrot.slane %v549, 1
    %v554 = vsub.f32 %v534, %v549
    %v555 = vsub.f32 %v535, %v551
    %v558 = vrot.slane %v555, 7
    %v559 = vsel %vm523, %v558, %v554
    %561 = vst.msk [vmem:[#allocation2] sm:$0x3] %vm526, %v559
    %v564 = vrot.slane %v519, 7
    %vm565 = vcmask 1042434
    %v566 = vsel %vm565, %v564, %v518
    %vm568 = vcmask 124929
    %v569 = vsel %vm568, %v566, -inf
    %570 = vmax.xlane.f32.xlu0 %v569
    %v571 = vpop.xlane.xlu0 %570
    %v573 = vrot.slane %v571, 1
    %v576 = vsub.f32 %v518, %v571
    %v577 = vsub.f32 %v519, %v573
    %v578 = vmul.f32 %v576, 1.442695
    %v579 = vpow.pop %v578
    %v580 = vmul.f32 %v577, 1.442695
    %v581 = vpow.pop %v580
    %v584 = vrot.slane %v581, 7
    %v585 = vsel %vm565, %v584, %v579
    %v587 = vsel %vm568, %v585, 0.0
    %588 = vadd.xlane.f32.xlu0 %v587
    %v589 = vpop.xlane.xlu0 %588
    %v590 = vlog2.pop %v589
    %v591 = vmul.f32 %v590, 0.6931472
    %v593 = vrot.slane %v591, 1
    %v596 = vsub.f32 %v576, %v591
    %v597 = vsub.f32 %v577, %v593
    %v600 = vrot.slane %v597, 7
    %v601 = vsel %vm565, %v600, %v596
    %603 = vst.msk [vmem:[#allocation4 - $0x1] sm:$0x6] %vm568, %v601
    // Predicated region
    $region30: #{tpu_custom_call.1} parent=1 // pred_check
      _
    $region31: #{tpu_custom_call.1} parent=1 // pred_check_branch
      %605 = sbr.rel (0) target = $region33
    $region32: #{tpu_custom_call.1} parent=1 // pred_region
      %s607 = ssub.s32 32, 32
      %608 = vsyncadd [#allocation3], %s607
      %s610 = sshll.u32 [#allocation2], 4
      %s611 = int_to_ptr.vmem [resolvable:$true] %s610
      %613 = dma.vmem_to_hbm [thread:$0]  %s611, 32, %s7, [#allocation3]
    $region33: #{tpu_custom_call.1} parent=1 // pred_fallthru
      _
    // Predicated region
    $region34: #{tpu_custom_call.1} parent=1 // pred_check
      _
    $region35: #{tpu_custom_call.1} parent=1 // pred_check_branch
      %615 = sbr.rel (0) target = $region37
    $region36: #{tpu_custom_call.1} parent=1 // pred_region
      %s617 = ssub.s32 32, 32
      %618 = vsyncadd [#allocation5], %s617
      %s620 = sshll.u32 [#allocation4], 4
      %s621 = int_to_ptr.vmem [resolvable:$true] %s620
      %623 = dma.vmem_to_hbm [thread:$0]  %s621, 32, %s8, [#allocation5]
    $region37: #{tpu_custom_call.1} parent=1 // pred_fallthru
      _
    // Predicated region
    $region38: #{tpu_custom_call.1} parent=1 // pred_check
      _
    $region39: #{tpu_custom_call.1} parent=1 // pred_check_branch
      %625 = sbr.rel (0) target = $region41
    $region40: #{tpu_custom_call.1} parent=1 // pred_region
      %626 = dma.done [#allocation3], 32
    $region41: #{tpu_custom_call.1} parent=1 // pred_fallthru
      _
    // Predicated region
    $region42: #{tpu_custom_call.1} parent=1 // pred_check
      _
    $region43: #{tpu_custom_call.1} parent=1 // pred_check_branch
      %628 = sbr.rel (0) target = $region45
    $region44: #{tpu_custom_call.1} parent=1 // pred_region
      %629 = dma.done [#allocation5], 32
    $region45: #{tpu_custom_call.1} parent=1 // pred_fallthru
      _
    %630 = vsyncpa [#allocation3], 1
    %631 = vsyncpa [#allocation5], 1

</llo_original>
